<compile_context>
chip_gen: v5e
topology: v5e:2x2
jax: 0.10.0
libtpu: 0.0.40
codegen_flags: <defaults>
</compile_context>

<pallas_src>
import functools

import jax
import jax.numpy as jnp
from jax.experimental import pallas as pl
from jax.experimental.pallas import tpu as pltpu

IGNORE_LABEL = -1
OHEM_THRESH = 0.7
OHEM_MINKEEP = 16          # per-image minimum kept pixels (synthetic configer value)
INVALID_LOSS = -1.0        # sentinel for ignored / padded pixels (exact in bf16)
LOSS_DTYPE = jnp.bfloat16  # intermediate loss map dtype (bf16 = half HBM traffic)


# --------------------------------------------------------------------------- #
# Kernel 1: per-pixel cross-entropy loss (pixel-major, dense 2-D pixel layout)
# --------------------------------------------------------------------------- #
def _pixel_loss_kernel(ignore_label, num_classes, logits_ref, labels_ref, loss_ref):
    """Block shapes:
      logits_ref: (1, C, TR, 128)   (any float dtype; computed in f32)
      labels_ref: (1, 1, TR, 128)   int32
      loss_ref  : (1, TR, 128)      bf16; invalid pixels = INVALID_LOSS
    """
    x = logits_ref[...].astype(jnp.float32)          # (1, C, TR, 128)
    lbl = labels_ref[...]                            # (1, 1, TR, 128)
    valid = lbl != ignore_label
    tgt = jnp.where(valid, lbl, 0)                   # clamp ignore -> class 0

    # Unrolled max over the small class axis (class is a major dim: pure VPU,
    # no iota / one-hot / cross-lane work).
    m = x[:, 0:1]
    for cc in range(1, num_classes):
        m = jnp.maximum(m, x[:, cc:cc + 1])

    # Unrolled sum-of-exps + target-logit gather via a C-way select chain.
    # Only (1,1,TR,128)-sized temporaries beyond the input block.
    row0 = x[:, 0:1] - m
    s = jnp.exp(row0)
    logit_t = row0
    for cc in range(1, num_classes):
        row = x[:, cc:cc + 1] - m
        s = s + jnp.exp(row)
        logit_t = jnp.where(tgt == cc, row, logit_t)

    loss = jnp.log(s) - logit_t                      # = -log softmax_target >= 0
    loss = jnp.where(valid, loss, INVALID_LOSS)      # (1, 1, TR, 128)
    loss_ref[...] = loss[:, 0].astype(loss_ref.dtype)


# --------------------------------------------------------------------------- #
# Kernel 2: per-tile masked partial sum & count (independent tiles, no RMW)
# --------------------------------------------------------------------------- #
def _ohem_reduce_kernel(thr_ref, loss_ref, out_ref):
    """Block shapes:
      thr_ref : (1,) f32 in SMEM — loss-space threshold (-log(prob threshold))
      loss_ref: (1, TR2, 128) bf16 (invalid pixels = -1.0, never > thr)
      out_ref : (1, 1, 2, 128) f32 — row 0: lane-partial sums, row 1: counts
    """
    thr = thr_ref[0]
    loss = loss_ref[...].astype(jnp.float32)                  # (1, TR2, 128)
    keep = (loss > thr).astype(jnp.float32)                   # sentinel excluded
    lane_sum = jnp.sum(loss * keep, axis=1, keepdims=True)    # (1, 1, 128)
    lane_cnt = jnp.sum(keep, axis=1, keepdims=True)           # (1, 1, 128)
    out_ref[:, :, 0:1, :] = lane_sum[:, None, :, :]
    out_ref[:, :, 1:2, :] = lane_cnt[:, None, :, :]


# --------------------------------------------------------------------------- #
# Tiling / VMEM planning helpers (all trace-time Python on static shapes)
# --------------------------------------------------------------------------- #
def _largest_divisor_leq(n, cap):
    for d in range(min(n, cap), 0, -1):
        if n % d == 0:
            return d
    return 1


@functools.lru_cache(maxsize=1)
def _vmem_limit_bytes():
    """Raise the scoped-VMEM limit but stay within half of physical VMEM
    (v7x has only 64 MiB physical per TensorCore)."""
    try:
        phys = int(pltpu.get_tpu_info().vmem_capacity_bytes)
    except Exception:
        phys = 64 << 20  # conservative default (v7x physical)
    return min(phys // 2, 64 << 20)


def _plan_tiling(hw, num_classes):
    """Return (padded_rows, pass1_tile_rows, pass2_tile_rows), rows of 128 px."""
    r0 = -(-hw // 128)                         # rows needed to hold hw pixels
    cap1 = 256 if num_classes <= 16 else 128   # 32K / 16K pixels per pass-1 step
    if r0 <= cap1:
        r_pad, tr1 = r0, r0                    # one tile per image
    else:
        d = _largest_divisor_leq(r0, cap1)
        if d >= max(16, cap1 // 4):
            r_pad, tr1 = r0, d                 # good divisor: no padding needed
        else:
            # Awkward factorization (e.g. prime row count, 769x769): pad rows
            # up to a multiple of the cap; padded pixels carry ignore_label.
            tr1 = cap1
            r_pad = -(-r0 // cap1) * cap1
    tr2 = _largest_divisor_leq(r_pad, 2048)    # up to 256K px per reduce step
    return r_pad, tr1, tr2


# --------------------------------------------------------------------------- #
# Forward
# --------------------------------------------------------------------------- #
@functools.partial(jax.jit, static_argnames=("thresh", "min_kept", "ignore_label"))
def seg_ohem_ce_loss(logits_nchw, labelmap, *, thresh=OHEM_THRESH,
                     min_kept=OHEM_MINKEEP, ignore_label=IGNORE_LABEL):
    n, c, h, w = logits_nchw.shape
    hw = h * w

    r_pad, tr1, tr2 = _plan_tiling(hw, c)
    hw_pad = r_pad * 128
    vmem_limit = _vmem_limit_bytes()

    # Free reshapes (NCHW is already pixel-minor): no transpose.  Padding (only
    # for lane/tile-unaligned resolutions) uses ignore_label so padded pixels
    # never contribute to the threshold, the sum, or the count.
    logits = logits_nchw.reshape(n, c, hw)
    labels = labelmap.reshape(n, hw).astype(jnp.int32)
    if hw_pad != hw:
        pad = hw_pad - hw
        logits = jnp.pad(logits, ((0, 0), (0, 0), (0, pad)))
        labels = jnp.pad(labels, ((0, 0), (0, pad)), constant_values=ignore_label)
    logits = logits.reshape(n, c, r_pad, 128)
    labels = labels.reshape(n, 1, r_pad, 128)

    # --- Pass 1: per-pixel CE loss (lane+sublane dense bf16, sentinel -1) ---
    loss = pl.pallas_call(
        functools.partial(_pixel_loss_kernel, ignore_label, c),
        out_shape=jax.ShapeDtypeStruct((n, r_pad, 128), LOSS_DTYPE),
        grid_spec=pltpu.PrefetchScalarGridSpec(
            num_scalar_prefetch=0,
            grid=(n, r_pad // tr1),
            in_specs=[
                pl.BlockSpec((1, c, tr1, 128), lambda i, j: (i, 0, j, 0)),
                pl.BlockSpec((1, 1, tr1, 128), lambda i, j: (i, 0, j, 0)),
            ],
            out_specs=pl.BlockSpec((1, tr1, 128), lambda i, j: (i, j, 0)),
        ),
        compiler_params=pltpu.CompilerParams(
            dimension_semantics=("parallel", "parallel"),
            vmem_limit_bytes=vmem_limit),
    )(logits, labels)

    # --- OHEM dynamic threshold in loss space (k-th largest loss == k-th
    #     smallest prob); tiny k, computed directly on the bf16 loss map. ---
    batch_kept = int(min_kept) * n
    p_total = n * hw_pad
    k = min(batch_kept + 1, p_total)
    loss_flat = loss.reshape(p_total)                       # sentinel = -1.0
    num_valid = jnp.sum((labelmap != ignore_label).astype(jnp.int32))
    topk_loss, _ = jax.lax.top_k(loss_flat, k)              # descending
    idx = jnp.clip(jnp.minimum(jnp.int32(batch_kept), num_valid - 1), 0, k - 1)
    loss_kth = jnp.take(topk_loss, idx).astype(jnp.float32)  # = -log(min_threshold)
    # keep <=> prob < max(min_threshold, thresh) <=> loss > min(loss_kth, -log(thresh))
    loss_thr = jnp.minimum(loss_kth, -jnp.log(jnp.float32(thresh)))
    thr_arr = loss_thr.reshape(1).astype(jnp.float32)

    # --- Pass 2: independent per-tile partial (sum, count) lane vectors ---
    n_tiles2 = r_pad // tr2
    partials = pl.pallas_call(
        _ohem_reduce_kernel,
        out_shape=jax.ShapeDtypeStruct((n, n_tiles2, 2, 128), jnp.float32),
        grid_spec=pltpu.PrefetchScalarGridSpec(
            num_scalar_prefetch=0,
            grid=(n, n_tiles2),
            in_specs=[
                pl.BlockSpec(memory_space=pltpu.MemorySpace.SMEM),  # threshold
                pl.BlockSpec((1, tr2, 128), lambda i, j: (i, j, 0)),
            ],
            out_specs=pl.BlockSpec((1, 1, 2, 128), lambda i, j: (i, j, 0, 0)),
        ),
        compiler_params=pltpu.CompilerParams(
            dimension_semantics=("parallel", "parallel"),
            vmem_limit_bytes=vmem_limit),
    )(thr_arr, loss)

    loss_sum = jnp.sum(partials[:, :, 0, :])
    keep_cnt = jnp.sum(partials[:, :, 1, :])
    # Guard the empty-keep edge case (all pixels ignored / none below threshold).
    mean_loss = loss_sum / jnp.maximum(keep_cnt, 1.0)
    return dict(loss=mean_loss)


class SegOhemCELoss:
    """Mirror of the PyTorch module: forward(out_dict, data_dict) -> dict(loss=...)."""

    def __init__(self, configer=None):
        self.configer = configer

    def __call__(self, out_dict, data_dict, **kwargs):
        loss = seg_ohem_ce_loss(out_dict["out"], data_dict["labelmap"])["loss"]
        return dict(loss=loss)


if __name__ == "__main__":
    key = jax.random.PRNGKey(0)
    k_logit, k_label, k_ignore = jax.random.split(key, 3)

    N, C, H, W = 2, 4, 16, 16
    logits = jax.random.normal(k_logit, (N, C, H, W), dtype=jnp.float32)
    labels = jax.random.randint(k_label, (N, H, W), 0, C, dtype=jnp.int32)
    # Sprinkle in some ignore-label pixels.
    ignore_mask = jax.random.uniform(k_ignore, (N, H, W)) < 0.1
    labels = jnp.where(ignore_mask, IGNORE_LABEL, labels)

    module = SegOhemCELoss()
    out = module({"out": logits}, {"labelmap": labels})
    loss = jax.block_until_ready(out["loss"])
    assert jnp.isfinite(loss), "loss is not finite"
    print("KERNEL_OK")
</pallas_src>

<mosaic_0001>
module attributes {stable_mosaic.version = 11 : i64} {
  func.func @_pixel_loss_kernel(%arg0: i32, %arg1: i32, %arg2: memref<1x4x2x128xf32, #tpu.memory_space<vmem>>, %arg3: memref<1x1x2x128xi32, #tpu.memory_space<vmem>>, %arg4: memref<1x2x128xbf16, #tpu.memory_space<vmem>>) attributes {dimension_semantics = [#tpu.dimension_semantics<parallel>, #tpu.dimension_semantics<parallel>], iteration_bounds = array<i64: 2, 1>, scalar_prefetch = 0 : i64, scratch_operands = 0 : i64, tpu.core_type = #tpu.core_type<tc>, window_params = [{transform_indices = @transform_0, window_bounds = array<i64: 1, 4, 2, 128>}, {transform_indices = @transform_1, window_bounds = array<i64: 1, 1, 2, 128>}, {transform_indices = @transform_2, window_bounds = array<i64: 1, 2, 128>}]} {
    %c0 = arith.constant 0 : index
    %c0_0 = arith.constant 0 : index
    %c0_1 = arith.constant 0 : index
    %c0_2 = arith.constant 0 : index
    %0 = vector.load %arg2[%c0, %c0_0, %c0_1, %c0_2] : memref<1x4x2x128xf32, #tpu.memory_space<vmem>>, vector<1x4x2x128xf32>
    %c0_3 = arith.constant 0 : index
    %c0_4 = arith.constant 0 : index
    %c0_5 = arith.constant 0 : index
    %c0_6 = arith.constant 0 : index
    %1 = vector.load %arg3[%c0_3, %c0_4, %c0_5, %c0_6] : memref<1x1x2x128xi32, #tpu.memory_space<vmem>>, vector<1x1x2x128xi32>
    %c-1_i32 = arith.constant -1 : i32
    %2 = vector.broadcast %c-1_i32 : i32 to vector<1x1x2x128xi32>
    %3 = arith.cmpi ne, %1, %2 : vector<1x1x2x128xi32>
    %c0_i32 = arith.constant 0 : i32
    %4 = vector.broadcast %c0_i32 : i32 to vector<1x1x2x128xi32>
    %5 = arith.select %3, %1, %4 : vector<1x1x2x128xi1>, vector<1x1x2x128xi32>
    %6 = vector.extract_strided_slice %0 {offsets = [0, 0, 0, 0], sizes = [1, 1, 2, 128], strides = [1, 1, 1, 1]} : vector<1x4x2x128xf32> to vector<1x1x2x128xf32>
    %7 = vector.extract_strided_slice %0 {offsets = [0, 1, 0, 0], sizes = [1, 1, 2, 128], strides = [1, 1, 1, 1]} : vector<1x4x2x128xf32> to vector<1x1x2x128xf32>
    %8 = arith.maximumf %6, %7 : vector<1x1x2x128xf32>
    %9 = vector.extract_strided_slice %0 {offsets = [0, 2, 0, 0], sizes = [1, 1, 2, 128], strides = [1, 1, 1, 1]} : vector<1x4x2x128xf32> to vector<1x1x2x128xf32>
    %10 = arith.maximumf %8, %9 : vector<1x1x2x128xf32>
    %11 = vector.extract_strided_slice %0 {offsets = [0, 3, 0, 0], sizes = [1, 1, 2, 128], strides = [1, 1, 1, 1]} : vector<1x4x2x128xf32> to vector<1x1x2x128xf32>
    %12 = arith.maximumf %10, %11 : vector<1x1x2x128xf32>
    %13 = vector.extract_strided_slice %0 {offsets = [0, 0, 0, 0], sizes = [1, 1, 2, 128], strides = [1, 1, 1, 1]} : vector<1x4x2x128xf32> to vector<1x1x2x128xf32>
    %14 = arith.subf %13, %12 : vector<1x1x2x128xf32>
    %15 = math.exp %14 : vector<1x1x2x128xf32>
    %16 = vector.extract_strided_slice %0 {offsets = [0, 1, 0, 0], sizes = [1, 1, 2, 128], strides = [1, 1, 1, 1]} : vector<1x4x2x128xf32> to vector<1x1x2x128xf32>
    %17 = arith.subf %16, %12 : vector<1x1x2x128xf32>
    %18 = math.exp %17 : vector<1x1x2x128xf32>
    %19 = arith.addf %15, %18 : vector<1x1x2x128xf32>
    %c1_i32 = arith.constant 1 : i32
    %20 = vector.broadcast %c1_i32 : i32 to vector<1x1x2x128xi32>
    %21 = arith.cmpi eq, %5, %20 : vector<1x1x2x128xi32>
    %22 = arith.select %21, %17, %14 : vector<1x1x2x128xi1>, vector<1x1x2x128xf32>
    %23 = vector.extract_strided_slice %0 {offsets = [0, 2, 0, 0], sizes = [1, 1, 2, 128], strides = [1, 1, 1, 1]} : vector<1x4x2x128xf32> to vector<1x1x2x128xf32>
    %24 = arith.subf %23, %12 : vector<1x1x2x128xf32>
    %25 = math.exp %24 : vector<1x1x2x128xf32>
    %26 = arith.addf %19, %25 : vector<1x1x2x128xf32>
    %c2_i32 = arith.constant 2 : i32
    %27 = vector.broadcast %c2_i32 : i32 to vector<1x1x2x128xi32>
    %28 = arith.cmpi eq, %5, %27 : vector<1x1x2x128xi32>
    %29 = arith.select %28, %24, %22 : vector<1x1x2x128xi1>, vector<1x1x2x128xf32>
    %30 = vector.extract_strided_slice %0 {offsets = [0, 3, 0, 0], sizes = [1, 1, 2, 128], strides = [1, 1, 1, 1]} : vector<1x4x2x128xf32> to vector<1x1x2x128xf32>
    %31 = arith.subf %30, %12 : vector<1x1x2x128xf32>
    %32 = math.exp %31 : vector<1x1x2x128xf32>
    %33 = arith.addf %26, %32 : vector<1x1x2x128xf32>
    %c3_i32 = arith.constant 3 : i32
    %34 = vector.broadcast %c3_i32 : i32 to vector<1x1x2x128xi32>
    %35 = arith.cmpi eq, %5, %34 : vector<1x1x2x128xi32>
    %36 = arith.select %35, %31, %29 : vector<1x1x2x128xi1>, vector<1x1x2x128xf32>
    %37 = math.log %33 : vector<1x1x2x128xf32>
    %38 = arith.subf %37, %36 : vector<1x1x2x128xf32>
    %cst = arith.constant -1.000000e+00 : f32
    %39 = vector.broadcast %cst : f32 to vector<1x1x2x128xf32>
    %40 = arith.select %3, %38, %39 : vector<1x1x2x128xi1>, vector<1x1x2x128xf32>
    %41 = vector.shape_cast %40 : vector<1x1x2x128xf32> to vector<1x2x128xf32>
    %42 = arith.truncf %41 : vector<1x2x128xf32> to vector<1x2x128xbf16>
    %c0_7 = arith.constant 0 : index
    %c0_8 = arith.constant 0 : index
    %c0_9 = arith.constant 0 : index
    %43 = vector.load %arg4[%c0_7, %c0_8, %c0_9] : memref<1x2x128xbf16, #tpu.memory_space<vmem>>, vector<1x2x128xbf16>
    tpu.vector_store %arg4[%c0_7, %c0_8, %c0_9], %42 {strides = array<i32>} : memref<1x2x128xbf16, #tpu.memory_space<vmem>>, vector<1x2x128xbf16>,
    return
  }
  func.func @transform_0(%arg0: i32, %arg1: i32) -> (i32, i32, i32, i32) {
    %c0_i32 = arith.constant 0 : i32
    %c0_i32_0 = arith.constant 0 : i32
    %c0_i32_1 = arith.constant 0 : i32
    return %arg0, %c0_i32, %arg1, %c0_i32_0 : i32, i32, i32, i32
  }
  func.func @transform_1(%arg0: i32, %arg1: i32) -> (i32, i32, i32, i32) {
    %c0_i32 = arith.constant 0 : i32
    %c0_i32_0 = arith.constant 0 : i32
    %c0_i32_1 = arith.constant 0 : i32
    return %arg0, %c0_i32, %arg1, %c0_i32_0 : i32, i32, i32, i32
  }
  func.func @transform_2(%arg0: i32, %arg1: i32) -> (i32, i32, i32) {
    %c0_i32 = arith.constant 0 : i32
    %c0_i32_0 = arith.constant 0 : i32
    return %arg0, %arg1, %c0_i32 : i32, i32, i32
  }
}

module attributes {stable_mosaic.version = 11 : i64} {
  func.func @_ohem_reduce_kernel(%arg0: i32, %arg1: i32, %arg2: memref<1xf32, #tpu.memory_space<smem>>, %arg3: memref<1x2x128xbf16, #tpu.memory_space<vmem>>, %arg4: memref<1x1x2x128xf32, #tpu.memory_space<vmem>>) attributes {dimension_semantics = [#tpu.dimension_semantics<parallel>, #tpu.dimension_semantics<parallel>], iteration_bounds = array<i64: 2, 1>, scalar_prefetch = 0 : i64, scratch_operands = 0 : i64, tpu.core_type = #tpu.core_type<tc>, window_params = [{transform_indices = @transform_0, window_bounds = array<i64: 1>}, {transform_indices = @transform_1, window_bounds = array<i64: 1, 2, 128>}, {transform_indices = @transform_2, window_bounds = array<i64: 1, 1, 2, 128>}]} {
    %c0 = arith.constant 0 : index
    %0 = memref.load %arg2[%c0] : memref<1xf32, #tpu.memory_space<smem>>
    %c0_0 = arith.constant 0 : index
    %c0_1 = arith.constant 0 : index
    %c0_2 = arith.constant 0 : index
    %1 = vector.load %arg3[%c0_0, %c0_1, %c0_2] : memref<1x2x128xbf16, #tpu.memory_space<vmem>>, vector<1x2x128xbf16>
    %2 = arith.extf %1 : vector<1x2x128xbf16> to vector<1x2x128xf32>
    %3 = vector.broadcast %0 : f32 to vector<1x2x128xf32>
    %4 = arith.cmpf ogt, %2, %3 : vector<1x2x128xf32>
    %5 = arith.extui %4 : vector<1x2x128xi1> to vector<1x2x128xi32>
    %6 = arith.sitofp %5 : vector<1x2x128xi32> to vector<1x2x128xf32>
    %7 = arith.mulf %2, %6 : vector<1x2x128xf32>
    %cst = arith.constant dense<0.000000e+00> : vector<1x128xf32>
    %8 = vector.multi_reduction <add>, %7, %cst [1] : vector<1x2x128xf32> to vector<1x128xf32>
    %9 = vector.shape_cast %8 : vector<1x128xf32> to vector<1x1x128xf32>
    %cst_3 = arith.constant dense<0.000000e+00> : vector<1x128xf32>
    %10 = vector.multi_reduction <add>, %6, %cst_3 [1] : vector<1x2x128xf32> to vector<1x128xf32>
    %11 = vector.shape_cast %10 : vector<1x128xf32> to vector<1x1x128xf32>
    %12 = vector.shape_cast %9 : vector<1x1x128xf32> to vector<1x1x1x128xf32>
    %c0_4 = arith.constant 0 : index
    %c0_5 = arith.constant 0 : index
    %c0_6 = arith.constant 0 : index
    %c0_7 = arith.constant 0 : index
    %13 = vector.load %arg4[%c0_4, %c0_5, %c0_6, %c0_7] : memref<1x1x2x128xf32, #tpu.memory_space<vmem>>, vector<1x1x1x128xf32>
    tpu.vector_store %arg4[%c0_4, %c0_5, %c0_6, %c0_7], %12 {strides = array<i32>} : memref<1x1x2x128xf32, #tpu.memory_space<vmem>>, vector<1x1x1x128xf32>,
    %14 = vector.shape_cast %11 : vector<1x1x128xf32> to vector<1x1x1x128xf32>
    %c0_8 = arith.constant 0 : index
    %c0_9 = arith.constant 0 : index
    %c1 = arith.constant 1 : index
    %c0_10 = arith.constant 0 : index
    %15 = vector.load %arg4[%c0_8, %c0_9, %c1, %c0_10] : memref<1x1x2x128xf32, #tpu.memory_space<vmem>>, vector<1x1x1x128xf32>
    tpu.vector_store %arg4[%c0_8, %c0_9, %c1, %c0_10], %14 {strides = array<i32>} : memref<1x1x2x128xf32, #tpu.memory_space<vmem>>, vector<1x1x1x128xf32>,
    return
  }
  func.func @transform_0(%arg0: i32, %arg1: i32) -> i32 {
    %c0_i32 = arith.constant 0 : i32
    %c0_i32_0 = arith.constant 0 : i32
    return %c0_i32 : i32
  }
  func.func @transform_1(%arg0: i32, %arg1: i32) -> (i32, i32, i32) {
    %c0_i32 = arith.constant 0 : i32
    %c0_i32_0 = arith.constant 0 : i32
    return %arg0, %arg1, %c0_i32 : i32, i32, i32
  }
  func.func @transform_2(%arg0: i32, %arg1: i32) -> (i32, i32, i32, i32) {
    %c0_i32 = arith.constant 0 : i32
    %c0_i32_0 = arith.constant 0 : i32
    %c0_i32_1 = arith.constant 0 : i32
    return %arg0, %arg1, %c0_i32, %c0_i32_0 : i32, i32, i32, i32
  }
}

</mosaic_0001>

<llo_original>
// kernel: seg_ohem_ce_loss.3
$region0: #{seg_ohem_ce_loss.3}
  #allocation0 [shape = 'u32[]', space=smem, size = 0x4, offset = 0x4, fixed_abs, tag = 'smem constant byte address 0x4 - core index']
  #allocation1 [shape = 'u32[72,128]{1,0:T(1,128)}', space=vmem, size = 0x9000, scoped, tag = 'internal scratch']
  #allocation2 [shape = 'f32[1]{0:T(128)S(6)}', space=smem, size = 0x200, scoped, tag = 'scoped memory for seg_ohem_ce_loss.3']
  %s0 = inlined_call_operand.<no memory space> [shape: f32[1], index: 0, kind: input, shape index: {}]
  %s1 = inlined_call_operand.vmem [shape: bf16[2,2,128], index: 1, kind: input, shape index: {}]
  %s2 = inlined_call_operand.vmem [shape: f32[2,1,2,128], index: 2, kind: output, shape index: {}]
  %s3 = sld [smem:[#allocation0]]
  $region41: #{seg_ohem_ce_loss.3} parent=0
    _
  %s5 = ssub.s32 1, %s3
  %s6 = scalar_select 0, %s5, %s3
  %7 = sst [smem:[#allocation2]] %s0
  loop: start=0, step=1, limit=4
  $region2: #{seg_ohem_ce_loss.3} parent=0 // loop_pre_header
    _
  $region3: #{seg_ohem_ce_loss.3} parent=0 // loop_header
    %s9 = sphi 0, %s13
    %p10 = scmp.ge.s32.totalorder %s9, 4
    %s16 = sphi 0, %s28
    %s17 = sphi 0, %s24
    %s18 = sphi 0, %s16
    %s19 = sphi 0, %s17
    %s20 = sphi 0, %s18
    %s21 = sphi 0, %s19
    %s29 = sphi 0, %s29
    %s31 = sphi 0, %s29
    %s32 = sphi 0, %s31
    %s46 = sphi 0, %s32
    %s54 = sphi 0, %s56
    %s57 = sphi 0, %s54
    %s58 = sphi 0, %s57
    %s74 = sphi 0, %s58
    %s82 = sphi 0, %s84
    %s85 = sphi 0, %s82
    %s86 = sphi 0, %s85
    %s102 = sphi 0, %s86
  $region4: #{seg_ohem_ce_loss.3} parent=0 // loop_header_branch
    %12 = sbr.rel (%p10) target = $region8
  $region5: #{seg_ohem_ce_loss.3} parent=0 // loop_body
    %s14 = ssub.s32 %s9, 1
    %s15 = ssub.s32 %s9, 2
    %s22 = sadd.s32 1, %s17
    %p23 = scmp.ge.s32.totalorder %s22, 1
    %s24 = scalar_select %p23, 0, %s22
    %s25 = sadd.s32 1, %s16
    %s26 = scalar_select %p23, %s25, %s16
    %p27 = scmp.ge.s32.totalorder %s26, 2
    %s28 = scalar_select %p27, 0, %s26
    %s30 = sadd.s32 %s29, 1
    %p33 = scmp.eq.s32.totalorder %s9, 1
    %p34 = scmp.ne.s32.totalorder %s29, %s31
    %p35 = scmp.eq.s32.totalorder %s9, 0
    %p36 = por %p34, %p35
    %p37 = scmp.ne.s32.totalorder %s29, %s31
    %p38 = scmp.eq.s32.totalorder %s14, 1
    %p39 = por %p37, %p38
    %p40 = scmp.ne.s32.totalorder %s31, %s32
    %p41 = scmp.eq.s32.totalorder %s14, 0
    %p42 = por %p40, %p41
    %p43 = scmp.ne.s32.totalorder %s31, %s32
    %p44 = scmp.eq.s32.totalorder %s15, 1
    %p45 = por %p43, %p44
    %p47 = scmp.ne.s32.totalorder %s32, %s46
    %p48 = scmp.eq.s32.totalorder %s15, 0
    %p49 = por %p47, %p48
    %s50 = ssub.s32 %s16, %s28
    %s51 = ssub.s32 %s17, %s24
    %s52 = sor.u32 %s50, %s51
    %p53 = scmp.eq.s32.totalorder %s52, 0
    %s55 = sadd.s32 %s54, 1
    %s56 = scalar_select %p53, %s54, %s55
    %p59 = pneg %p53
    %p60 = scmp.eq.s32.totalorder %s9, 1
    %p61 = por %p59, %p60
    %p62 = scmp.ne.s32.totalorder %s54, %s57
    %p63 = scmp.eq.s32.totalorder %s9, 0
    %p64 = por %p62, %p63
    %p65 = scmp.ne.s32.totalorder %s54, %s57
    %p66 = scmp.eq.s32.totalorder %s14, 1
    %p67 = por %p65, %p66
    %p68 = scmp.ne.s32.totalorder %s57, %s58
    %p69 = scmp.eq.s32.totalorder %s14, 0
    %p70 = por %p68, %p69
    %p71 = scmp.ne.s32.totalorder %s57, %s58
    %p72 = scmp.eq.s32.totalorder %s15, 1
    %p73 = por %p71, %p72
    %p75 = scmp.ne.s32.totalorder %s58, %s74
    %p76 = scmp.eq.s32.totalorder %s15, 0
    %p77 = por %p75, %p76
    %s78 = ssub.s32 %s16, %s28
    %s79 = ssub.s32 %s17, %s24
    %s80 = sor.u32 %s78, %s79
    %p81 = scmp.eq.s32.totalorder %s80, 0
    %s83 = sadd.s32 %s82, 1
    %s84 = scalar_select %p81, %s82, %s83
    %p87 = pneg %p81
    %p88 = scmp.eq.s32.totalorder %s9, 1
    %p89 = por %p87, %p88
    %p90 = scmp.ne.s32.totalorder %s82, %s85
    %p91 = scmp.eq.s32.totalorder %s9, 0
    %p92 = por %p90, %p91
    %p93 = scmp.ne.s32.totalorder %s82, %s85
    %p94 = scmp.eq.s32.totalorder %s14, 1
    %p95 = por %p93, %p94
    %p96 = scmp.ne.s32.totalorder %s85, %s86
    %p97 = scmp.eq.s32.totalorder %s14, 0
    %p98 = por %p96, %p97
    %p99 = scmp.ne.s32.totalorder %s85, %s86
    %p100 = scmp.eq.s32.totalorder %s15, 1
    %p101 = por %p99, %p100
    %p103 = scmp.ne.s32.totalorder %s86, %s102
    %p104 = scmp.eq.s32.totalorder %s15, 0
    %p105 = por %p103, %p104
    %p106 = scmp.le.s32.totalorder 1, %s9
    %p107 = scmp.lt.s32.totalorder %s9, 3
    %p108 = pnand %p106, %p107
    %p109 = pneg %p108
    // Predicated region
    $region9: #{seg_ohem_ce_loss.3} parent=5 // pred_check
      _
    $region10: #{seg_ohem_ce_loss.3} parent=5 // pred_check_branch
      %111 = sbr.rel (%p108) target = $region12
    $region11: #{seg_ohem_ce_loss.3} parent=5 // pred_region
      %s112 = ssub.s32 %s9, 1
      // Predicated region
      $region13: #{seg_ohem_ce_loss.3} parent=11 // pred_check
        %p113 = pneg %p42
      $region14: #{seg_ohem_ce_loss.3} parent=11 // pred_check_branch
        %115 = sbr.rel (%p113) target = $region16
      $region15: #{seg_ohem_ce_loss.3} parent=11 // pred_region
        _
      $region16: #{seg_ohem_ce_loss.3} parent=11 // pred_fallthru
        _
    $region12: #{seg_ohem_ce_loss.3} parent=5 // pred_fallthru
      _
    %p116 = scmp.lt.s32.totalorder %s9, 2
    // Predicated region
    $region17: #{seg_ohem_ce_loss.3} parent=5 // pred_check
      %p117 = pneg %p116
    $region18: #{seg_ohem_ce_loss.3} parent=5 // pred_check_branch
      %119 = sbr.rel (%p117) target = $region20
    $region19: #{seg_ohem_ce_loss.3} parent=5 // pred_region
      // Predicated region
      $region21: #{seg_ohem_ce_loss.3} parent=19 // pred_check
        %p120 = pneg %p64
      $region22: #{seg_ohem_ce_loss.3} parent=19 // pred_check_branch
        %122 = sbr.rel (%p120) target = $region24
      $region23: #{seg_ohem_ce_loss.3} parent=19 // pred_region
        %p123 = scmp.lt.s32.totalorder %s16, 1
        %s124 = scalar_select %p123, %s16, 1
        %p125 = scmp.lt.s32.totalorder %s17, 0
        %s126 = scalar_select %p125, %s17, 0
        %s127 = sadd.s32 %s126, %s124
        %s128 = scalar_lea.vmem %s1, %s127
      $region24: #{seg_ohem_ce_loss.3} parent=19 // pred_fallthru
        _
    $region20: #{seg_ohem_ce_loss.3} parent=5 // pred_fallthru
      _
    %p129 = scmp.le.s32.totalorder 1, %s9
    %p130 = scmp.lt.s32.totalorder %s9, 3
    %p131 = pnand %p129, %p130
    %p132 = pneg %p131
    // Predicated region
    $region25: #{seg_ohem_ce_loss.3} parent=5 // pred_check
      _
    $region26: #{seg_ohem_ce_loss.3} parent=5 // pred_check_branch
      %134 = sbr.rel (%p131) target = $region28
    $region27: #{seg_ohem_ce_loss.3} parent=5 // pred_region
      %s135 = ssub.s32 %s9, 1
      %p136 = pneg %p42
      %p137 = pneg %p39
      %p138 = scmp.lt.s32.totalorder %s18, 1
      %s139 = scalar_select %p138, %s18, 1
      %p140 = scmp.lt.s32.totalorder %s19, 0
      %s141 = scalar_select %p140, %s19, 0
      %s142 = sadd.s32 %s141, %s139
      %s143 = scalar_lea.vmem %s1, %s142
      %p144 = pneg %p70
      %p145 = pneg %p67
      %p146 = pneg %p98
      %p147 = pneg %p95
      %p148 = scmp.lt.s32.totalorder %s18, 1
      %s149 = scalar_select %p148, %s18, 1
      %p150 = scmp.lt.s32.totalorder %s19, 0
      %s151 = scalar_select %p150, %s19, 0
      %s152 = sadd.s32 %s151, %s149
      %s153 = smul.addr %s152, 2
      %s154 = scalar_lea.vmem %s2, %s153
      %p155 = scmp.lt.s32.totalorder %s18, 1
      %s156 = scalar_select %p155, %s18, 1
      %p157 = scmp.lt.s32.totalorder %s19, 0
      %s158 = scalar_select %p157, %s19, 0
      %s159 = sadd.s32 %s158, %s156
      %s160 = scalar_lea.vmem %s1, %s159
      %p161 = scmp.lt.s32.totalorder %s18, 1
      %s162 = scalar_select %p161, %s18, 1
      %p163 = scmp.lt.s32.totalorder %s19, 0
      %s164 = scalar_select %p163, %s19, 0
      %s165 = sadd.s32 %s164, %s162
      %s166 = smul.addr %s165, 2
      %s167 = scalar_lea.vmem %s2, %s166
      %s168 = sld [smem:[#allocation2]]
      %v169 = vld [vmem:[%s160] sm:$0x1]
      %v170 = vunpack.c.l.bf16 %v169
      %v171 = vstv %s168
      %vm172 = vcmp.gt.f32.partialorder %v170, %v171
      %v173 = vsel %vm172, 1, 0
      %v174 = vcvt.s32.f32 %v173
      %v175 = vmul.f32 %v170, %v174
      %vm176 = vcmask 1041408
      %v177 = vsel %vm176, %v175, 0.0
      %v178 = vrot.slane %v177, 4
      %v179 = vadd.f32 %v177, %v178
      %v180 = vrot.slane %v179, 2
      %v181 = vadd.f32 %v179, %v180
      %v182 = vrot.slane %v181, 1
      %v183 = vadd.f32 %v181, %v182
      %v184 = vsel %vm176, %v174, 0.0
      %v185 = vrot.slane %v184, 4
      %v186 = vadd.f32 %v184, %v185
      %v187 = vrot.slane %v186, 2
      %v188 = vadd.f32 %v186, %v187
      %v189 = vrot.slane %v188, 1
      %v190 = vadd.f32 %v188, %v189
      %191 = vst [vmem:[%s167] sm:$0x1] %v183
      %192 = vst [vmem:[%s167 + $0x1] sm:$0x1] %v190
      %p193 = scmp.lt.s32.totalorder %s18, 1
      %s194 = scalar_select %p193, %s18, 1
      %p195 = scmp.lt.s32.totalorder %s19, 0
      %s196 = scalar_select %p195, %s19, 0
      %s197 = sadd.s32 %s196, %s194
      %s198 = smul.addr %s197, 2
      %s199 = scalar_lea.vmem %s2, %s198
      // Predicated region
      $region29: #{seg_ohem_ce_loss.3} parent=27 // pred_check
        %p200 = pneg %p95
      $region30: #{seg_ohem_ce_loss.3} parent=27 // pred_check_branch
        %202 = sbr.rel (%p200) target = $region32
      $region31: #{seg_ohem_ce_loss.3} parent=27 // pred_region
        _
      $region32: #{seg_ohem_ce_loss.3} parent=27 // pred_fallthru
        _
    $region28: #{seg_ohem_ce_loss.3} parent=5 // pred_fallthru
      _
    %p203 = scmp.le.s32.totalorder 2, %s9
    // Predicated region
    $region33: #{seg_ohem_ce_loss.3} parent=5 // pred_check
      %p204 = pneg %p203
    $region34: #{seg_ohem_ce_loss.3} parent=5 // pred_check_branch
      %206 = sbr.rel (%p204) target = $region36
    $region35: #{seg_ohem_ce_loss.3} parent=5 // pred_region
      %s207 = ssub.s32 %s9, 2
      // Predicated region
      $region37: #{seg_ohem_ce_loss.3} parent=35 // pred_check
        %p208 = pneg %p101
      $region38: #{seg_ohem_ce_loss.3} parent=35 // pred_check_branch
        %210 = sbr.rel (%p208) target = $region40
      $region39: #{seg_ohem_ce_loss.3} parent=35 // pred_region
        %p211 = scmp.lt.s32.totalorder %s20, 1
        %s212 = scalar_select %p211, %s20, 1
        %p213 = scmp.lt.s32.totalorder %s21, 0
        %s214 = scalar_select %p213, %s21, 0
        %s215 = sadd.s32 %s214, %s212
        %s216 = smul.addr %s215, 2
        %s217 = scalar_lea.vmem %s2, %s216
      $region40: #{seg_ohem_ce_loss.3} parent=35 // pred_fallthru
        _
    $region36: #{seg_ohem_ce_loss.3} parent=5 // pred_fallthru
      _
  $region6: #{seg_ohem_ce_loss.3} parent=0 // loop_footer
    %s13 = sadd.s32 1, %s9
  $region7: #{seg_ohem_ce_loss.3} parent=0 // loop_footer_branch
    %8 = sbr.rel target = $region3
  $region8: #{seg_ohem_ce_loss.3} parent=0 // loop_exit
    _

// kernel: seg_ohem_ce_loss.2
$region0: #{seg_ohem_ce_loss.2}
  #allocation0 [shape = 'u32[]', space=smem, size = 0x4, offset = 0x4, fixed_abs, tag = 'smem constant byte address 0x4 - core index']
  #allocation1 [shape = 'u32[72,128]{1,0:T(1,128)}', space=vmem, size = 0x9000, scoped, tag = 'internal scratch']
  %s0 = inlined_call_operand.vmem [shape: f32[2,4,2,128], index: 0, kind: input, shape index: {}]
  %s1 = inlined_call_operand.vmem [shape: s32[2,1,2,128], index: 1, kind: input, shape index: {}]
  %s2 = inlined_call_operand.vmem [shape: bf16[2,2,128], index: 2, kind: output, shape index: {}]
  %s3 = sld [smem:[#allocation0]]
  $region41: #{seg_ohem_ce_loss.2} parent=0
    _
  %s5 = ssub.s32 1, %s3
  %s6 = scalar_select 0, %s5, %s3
  loop: start=0, step=1, limit=4
  $region2: #{seg_ohem_ce_loss.2} parent=0 // loop_pre_header
    _
  $region3: #{seg_ohem_ce_loss.2} parent=0 // loop_header
    %s8 = sphi 0, %s12
    %p9 = scmp.ge.s32.totalorder %s8, 4
    %s15 = sphi 0, %s27
    %s16 = sphi 0, %s23
    %s17 = sphi 0, %s15
    %s18 = sphi 0, %s16
    %s19 = sphi 0, %s17
    %s20 = sphi 0, %s18
    %s32 = sphi 0, %s34
    %s35 = sphi 0, %s32
    %s36 = sphi 0, %s35
    %s52 = sphi 0, %s36
    %s60 = sphi 0, %s62
    %s63 = sphi 0, %s60
    %s64 = sphi 0, %s63
    %s80 = sphi 0, %s64
    %s88 = sphi 0, %s90
    %s91 = sphi 0, %s88
    %s92 = sphi 0, %s91
    %s108 = sphi 0, %s92
  $region4: #{seg_ohem_ce_loss.2} parent=0 // loop_header_branch
    %11 = sbr.rel (%p9) target = $region8
  $region5: #{seg_ohem_ce_loss.2} parent=0 // loop_body
    %s13 = ssub.s32 %s8, 1
    %s14 = ssub.s32 %s8, 2
    %s21 = sadd.s32 1, %s16
    %p22 = scmp.ge.s32.totalorder %s21, 1
    %s23 = scalar_select %p22, 0, %s21
    %s24 = sadd.s32 1, %s15
    %s25 = scalar_select %p22, %s24, %s15
    %p26 = scmp.ge.s32.totalorder %s25, 2
    %s27 = scalar_select %p26, 0, %s25
    %s28 = ssub.s32 %s15, %s27
    %s29 = ssub.s32 %s16, %s23
    %s30 = sor.u32 %s28, %s29
    %p31 = scmp.eq.s32.totalorder %s30, 0
    %s33 = sadd.s32 %s32, 1
    %s34 = scalar_select %p31, %s32, %s33
    %p37 = pneg %p31
    %p38 = scmp.eq.s32.totalorder %s8, 1
    %p39 = por %p37, %p38
    %p40 = scmp.ne.s32.totalorder %s32, %s35
    %p41 = scmp.eq.s32.totalorder %s8, 0
    %p42 = por %p40, %p41
    %p43 = scmp.ne.s32.totalorder %s32, %s35
    %p44 = scmp.eq.s32.totalorder %s13, 1
    %p45 = por %p43, %p44
    %p46 = scmp.ne.s32.totalorder %s35, %s36
    %p47 = scmp.eq.s32.totalorder %s13, 0
    %p48 = por %p46, %p47
    %p49 = scmp.ne.s32.totalorder %s35, %s36
    %p50 = scmp.eq.s32.totalorder %s14, 1
    %p51 = por %p49, %p50
    %p53 = scmp.ne.s32.totalorder %s36, %s52
    %p54 = scmp.eq.s32.totalorder %s14, 0
    %p55 = por %p53, %p54
    %s56 = ssub.s32 %s15, %s27
    %s57 = ssub.s32 %s16, %s23
    %s58 = sor.u32 %s56, %s57
    %p59 = scmp.eq.s32.totalorder %s58, 0
    %s61 = sadd.s32 %s60, 1
    %s62 = scalar_select %p59, %s60, %s61
    %p65 = pneg %p59
    %p66 = scmp.eq.s32.totalorder %s8, 1
    %p67 = por %p65, %p66
    %p68 = scmp.ne.s32.totalorder %s60, %s63
    %p69 = scmp.eq.s32.totalorder %s8, 0
    %p70 = por %p68, %p69
    %p71 = scmp.ne.s32.totalorder %s60, %s63
    %p72 = scmp.eq.s32.totalorder %s13, 1
    %p73 = por %p71, %p72
    %p74 = scmp.ne.s32.totalorder %s63, %s64
    %p75 = scmp.eq.s32.totalorder %s13, 0
    %p76 = por %p74, %p75
    %p77 = scmp.ne.s32.totalorder %s63, %s64
    %p78 = scmp.eq.s32.totalorder %s14, 1
    %p79 = por %p77, %p78
    %p81 = scmp.ne.s32.totalorder %s64, %s80
    %p82 = scmp.eq.s32.totalorder %s14, 0
    %p83 = por %p81, %p82
    %s84 = ssub.s32 %s15, %s27
    %s85 = ssub.s32 %s16, %s23
    %s86 = sor.u32 %s84, %s85
    %p87 = scmp.eq.s32.totalorder %s86, 0
    %s89 = sadd.s32 %s88, 1
    %s90 = scalar_select %p87, %s88, %s89
    %p93 = pneg %p87
    %p94 = scmp.eq.s32.totalorder %s8, 1
    %p95 = por %p93, %p94
    %p96 = scmp.ne.s32.totalorder %s88, %s91
    %p97 = scmp.eq.s32.totalorder %s8, 0
    %p98 = por %p96, %p97
    %p99 = scmp.ne.s32.totalorder %s88, %s91
    %p100 = scmp.eq.s32.totalorder %s13, 1
    %p101 = por %p99, %p100
    %p102 = scmp.ne.s32.totalorder %s91, %s92
    %p103 = scmp.eq.s32.totalorder %s13, 0
    %p104 = por %p102, %p103
    %p105 = scmp.ne.s32.totalorder %s91, %s92
    %p106 = scmp.eq.s32.totalorder %s14, 1
    %p107 = por %p105, %p106
    %p109 = scmp.ne.s32.totalorder %s92, %s108
    %p110 = scmp.eq.s32.totalorder %s14, 0
    %p111 = por %p109, %p110
    %p112 = scmp.le.s32.totalorder 1, %s8
    %p113 = scmp.lt.s32.totalorder %s8, 3
    %p114 = pnand %p112, %p113
    %p115 = pneg %p114
    // Predicated region
    $region9: #{seg_ohem_ce_loss.2} parent=5 // pred_check
      _
    $region10: #{seg_ohem_ce_loss.2} parent=5 // pred_check_branch
      %117 = sbr.rel (%p114) target = $region12
    $region11: #{seg_ohem_ce_loss.2} parent=5 // pred_region
      %s118 = ssub.s32 %s8, 1
    $region12: #{seg_ohem_ce_loss.2} parent=5 // pred_fallthru
      _
    %p119 = scmp.lt.s32.totalorder %s8, 2
    // Predicated region
    $region13: #{seg_ohem_ce_loss.2} parent=5 // pred_check
      %p120 = pneg %p119
    $region14: #{seg_ohem_ce_loss.2} parent=5 // pred_check_branch
      %122 = sbr.rel (%p120) target = $region16
    $region15: #{seg_ohem_ce_loss.2} parent=5 // pred_region
      // Predicated region
      $region17: #{seg_ohem_ce_loss.2} parent=15 // pred_check
        %p123 = pneg %p42
      $region18: #{seg_ohem_ce_loss.2} parent=15 // pred_check_branch
        %125 = sbr.rel (%p123) target = $region20
      $region19: #{seg_ohem_ce_loss.2} parent=15 // pred_region
        %p126 = scmp.lt.s32.totalorder %s15, 1
        %s127 = scalar_select %p126, %s15, 1
        %p128 = scmp.lt.s32.totalorder %s16, 0
        %s129 = scalar_select %p128, %s16, 0
        %s130 = smul.addr %s127, 4
        %s131 = sadd.s32 %s129, %s130
        %s132 = smul.addr %s131, 2
        %s133 = scalar_lea.vmem %s0, %s132
      $region20: #{seg_ohem_ce_loss.2} parent=15 // pred_fallthru
        _
      // Predicated region
      $region21: #{seg_ohem_ce_loss.2} parent=15 // pred_check
        %p134 = pneg %p70
      $region22: #{seg_ohem_ce_loss.2} parent=15 // pred_check_branch
        %136 = sbr.rel (%p134) target = $region24
      $region23: #{seg_ohem_ce_loss.2} parent=15 // pred_region
        %p137 = scmp.lt.s32.totalorder %s15, 1
        %s138 = scalar_select %p137, %s15, 1
        %p139 = scmp.lt.s32.totalorder %s16, 0
        %s140 = scalar_select %p139, %s16, 0
        %s141 = sadd.s32 %s140, %s138
        %s142 = smul.addr %s141, 2
        %s143 = scalar_lea.vmem %s1, %s142
      $region24: #{seg_ohem_ce_loss.2} parent=15 // pred_fallthru
        _
    $region16: #{seg_ohem_ce_loss.2} parent=5 // pred_fallthru
      _
    %p144 = scmp.le.s32.totalorder 1, %s8
    %p145 = scmp.lt.s32.totalorder %s8, 3
    %p146 = pnand %p144, %p145
    %p147 = pneg %p146
    // Predicated region
    $region25: #{seg_ohem_ce_loss.2} parent=5 // pred_check
      _
    $region26: #{seg_ohem_ce_loss.2} parent=5 // pred_check_branch
      %149 = sbr.rel (%p146) target = $region28
    $region27: #{seg_ohem_ce_loss.2} parent=5 // pred_region
      %s150 = ssub.s32 %s8, 1
      %p151 = scmp.lt.s32.totalorder %s17, 1
      %s152 = scalar_select %p151, %s17, 1
      %p153 = scmp.lt.s32.totalorder %s18, 0
      %s154 = scalar_select %p153, %s18, 0
      %s155 = smul.addr %s152, 4
      %s156 = sadd.s32 %s154, %s155
      %s157 = smul.addr %s156, 2
      %s158 = scalar_lea.vmem %s0, %s157
      %p159 = pneg %p48
      %p160 = pneg %p45
      %p161 = scmp.lt.s32.totalorder %s17, 1
      %s162 = scalar_select %p161, %s17, 1
      %p163 = scmp.lt.s32.totalorder %s18, 0
      %s164 = scalar_select %p163, %s18, 0
      %s165 = sadd.s32 %s164, %s162
      %s166 = smul.addr %s165, 2
      %s167 = scalar_lea.vmem %s1, %s166
      %p168 = pneg %p76
      %p169 = pneg %p73
      %p170 = pneg %p104
      %p171 = pneg %p101
      %p172 = scmp.lt.s32.totalorder %s17, 1
      %s173 = scalar_select %p172, %s17, 1
      %p174 = scmp.lt.s32.totalorder %s18, 0
      %s175 = scalar_select %p174, %s18, 0
      %s176 = sadd.s32 %s175, %s173
      %s177 = scalar_lea.vmem %s2, %s176
      %p178 = scmp.lt.s32.totalorder %s17, 1
      %s179 = scalar_select %p178, %s17, 1
      %p180 = scmp.lt.s32.totalorder %s18, 0
      %s181 = scalar_select %p180, %s18, 0
      %s182 = smul.addr %s179, 4
      %s183 = sadd.s32 %s181, %s182
      %s184 = smul.addr %s183, 2
      %s185 = scalar_lea.vmem %s0, %s184
      %p186 = scmp.lt.s32.totalorder %s17, 1
      %s187 = scalar_select %p186, %s17, 1
      %p188 = scmp.lt.s32.totalorder %s18, 0
      %s189 = scalar_select %p188, %s18, 0
      %s190 = sadd.s32 %s189, %s187
      %s191 = smul.addr %s190, 2
      %s192 = scalar_lea.vmem %s1, %s191
      %p193 = scmp.lt.s32.totalorder %s17, 1
      %s194 = scalar_select %p193, %s17, 1
      %p195 = scmp.lt.s32.totalorder %s18, 0
      %s196 = scalar_select %p195, %s18, 0
      %s197 = sadd.s32 %s196, %s194
      %s198 = scalar_lea.vmem %s2, %s197
      %v199 = vld [vmem:[%s185] sm:$0x3]
      %v200 = vld [vmem:[%s185 + $0x2] sm:$0x3]
      %v201 = vld [vmem:[%s185 + $0x4] sm:$0x3]
      %v202 = vld [vmem:[%s185 + $0x6] sm:$0x3]
      %v203 = vld [vmem:[%s192] sm:$0x3]
      %vm204 = vcmp.ne.s32.totalorder %v203, 4294967295
      %v205 = vsel %vm204, %v203, 0
      %v206 = vmax.f32 %v199, %v200
      %v207 = vmax.f32 %v206, %v201
      %v208 = vmax.f32 %v207, %v202
      %v209 = vsub.f32 %v199, %v208
      %v210 = vmul.f32 %v209, 1.442695
      %v211 = vpow.pop %v210
      %v212 = vsub.f32 %v200, %v208
      %v213 = vmul.f32 %v212, 1.442695
      %v214 = vpow.pop %v213
      %v215 = vadd.f32 %v211, %v214
      %vm216 = vcmp.eq.s32.totalorder %v205, 1
      %v217 = vsel %vm216, %v212, %v209
      %v218 = vsub.f32 %v201, %v208
      %v219 = vmul.f32 %v218, 1.442695
      %v220 = vpow.pop %v219
      %v221 = vadd.f32 %v215, %v220
      %vm222 = vcmp.eq.s32.totalorder %v205, 2
      %v223 = vsel %vm222, %v218, %v217
      %v224 = vsub.f32 %v202, %v208
      %v225 = vmul.f32 %v224, 1.442695
      %v226 = vpow.pop %v225
      %v227 = vadd.f32 %v221, %v226
      %vm228 = vcmp.eq.s32.totalorder %v205, 3
      %v229 = vsel %vm228, %v224, %v223
      %v230 = vlog2.pop %v227
      %v231 = vmul.f32 %v230, 0.6931472
      %v232 = vsub.f32 %v231, %v229
      %v233 = vsel %vm204, %v232, -1.0
      %v234 = vpack.c.bf16 %v233, %v233
      %235 = vst [vmem:[%s198] sm:$0x1] %v234
      %p236 = scmp.lt.s32.totalorder %s17, 1
      %s237 = scalar_select %p236, %s17, 1
      %p238 = scmp.lt.s32.totalorder %s18, 0
      %s239 = scalar_select %p238, %s18, 0
      %s240 = sadd.s32 %s239, %s237
      %s241 = scalar_lea.vmem %s2, %s240
      // Predicated region
      $region29: #{seg_ohem_ce_loss.2} parent=27 // pred_check
        %p242 = pneg %p101
      $region30: #{seg_ohem_ce_loss.2} parent=27 // pred_check_branch
        %244 = sbr.rel (%p242) target = $region32
      $region31: #{seg_ohem_ce_loss.2} parent=27 // pred_region
        _
      $region32: #{seg_ohem_ce_loss.2} parent=27 // pred_fallthru
        _
    $region28: #{seg_ohem_ce_loss.2} parent=5 // pred_fallthru
      _
    %p245 = scmp.le.s32.totalorder 2, %s8
    // Predicated region
    $region33: #{seg_ohem_ce_loss.2} parent=5 // pred_check
      %p246 = pneg %p245
    $region34: #{seg_ohem_ce_loss.2} parent=5 // pred_check_branch
      %248 = sbr.rel (%p246) target = $region36
    $region35: #{seg_ohem_ce_loss.2} parent=5 // pred_region
      %s249 = ssub.s32 %s8, 2
      // Predicated region
      $region37: #{seg_ohem_ce_loss.2} parent=35 // pred_check
        %p250 = pneg %p107
      $region38: #{seg_ohem_ce_loss.2} parent=35 // pred_check_branch
        %252 = sbr.rel (%p250) target = $region40
      $region39: #{seg_ohem_ce_loss.2} parent=35 // pred_region
        %p253 = scmp.lt.s32.totalorder %s19, 1
        %s254 = scalar_select %p253, %s19, 1
        %p255 = scmp.lt.s32.totalorder %s20, 0
        %s256 = scalar_select %p255, %s20, 0
        %s257 = sadd.s32 %s256, %s254
        %s258 = scalar_lea.vmem %s2, %s257
      $region40: #{seg_ohem_ce_loss.2} parent=35 // pred_fallthru
        _
    $region36: #{seg_ohem_ce_loss.2} parent=5 // pred_fallthru
      _
  $region6: #{seg_ohem_ce_loss.2} parent=0 // loop_footer
    %s12 = sadd.s32 1, %s8
  $region7: #{seg_ohem_ce_loss.2} parent=0 // loop_footer_branch
    %7 = sbr.rel target = $region3
  $region8: #{seg_ohem_ce_loss.2} parent=0 // loop_exit
    _

</llo_original>
